<compile_context>
chip_gen: v6e
topology: v6e:2x2x1
jax: 0.10.0
libtpu: 0.0.40
codegen_flags: <defaults>
</compile_context>

<pallas_src>
import math

import jax
import jax.numpy as jnp
from jax.experimental import pallas as pl
from jax.experimental.pallas import tpu as pltpu

_INV_SQRT2 = float(1.0 / math.sqrt(2.0))


def _gelu_exact_f32(h):
    # Exact (erf-based) GELU in f32, matching F.gelu(approximate='none').
    return 0.5 * h * (1.0 + jax.lax.erf(h * jnp.float32(_INV_SQRT2)))


def _mlp_kernel_accum_out(x_ref, wfc_ref, wproj_ref, o_ref):
    """f32-output path: accumulate partial products directly into the resident
    output block (its block index is independent of the reduction axis)."""
    k = pl.program_id(1)
    h = jnp.dot(x_ref[...], wfc_ref[...], preferred_element_type=jnp.float32)
    h = _gelu_exact_f32(h)
    partial_out = jnp.dot(h.astype(wproj_ref.dtype), wproj_ref[...],
                          preferred_element_type=jnp.float32)

    @pl.when(k == 0)
    def _():
        o_ref[...] = partial_out

    @pl.when(k > 0)
    def _():
        o_ref[...] += partial_out


def _mlp_kernel_scratch_acc(x_ref, wfc_ref, wproj_ref, o_ref, acc_ref):
    """Non-f32-output path: f32 VMEM scratch accumulator, cast to the output
    dtype on the last reduction step."""
    k = pl.program_id(1)
    h = jnp.dot(x_ref[...], wfc_ref[...], preferred_element_type=jnp.float32)
    h = _gelu_exact_f32(h)
    partial_out = jnp.dot(h.astype(wproj_ref.dtype), wproj_ref[...],
                          preferred_element_type=jnp.float32)

    @pl.when(k == 0)
    def _():
        acc_ref[...] = partial_out

    @pl.when(k > 0)
    def _():
        acc_ref[...] += partial_out

    @pl.when(k == pl.num_programs(1) - 1)
    def _():
        o_ref[...] = acc_ref[...].astype(o_ref.dtype)


def _round_up(x, m):
    return (x + m - 1) // m * m


def _vmem_capacity_bytes():
    try:
        return int(pltpu.get_tpu_info().vmem_capacity_bytes)
    except Exception:
        return 128 << 20  # v5e / v6e physical VMEM


def _tile_vmem_bytes(tm, th, C, x_it, w_it, out_it, out_is_f32, weight_bufs):
    weights = weight_bufs * (C * th + th * C) * w_it   # fc + proj slabs
    x_tiles = 2 * tm * C * x_it                        # double-buffered input
    out_tiles = 2 * tm * C * out_it                    # double-buffered output
    intermediate = tm * th * (4 + w_it)                # f32 h + bf16 cast copy
    acc = 0 if out_is_f32 else tm * C * 4              # scratch accumulator
    return weights + x_tiles + out_tiles + intermediate + acc


def _choose_tiling(M, C, H, x_it, w_it, out_it, out_is_f32, usable_vmem,
                   margin=6 << 20):
    """Pick (tm, th, weights_resident).

    Prefers th == H (weights fully resident, single-buffered, fetched from HBM
    exactly once); otherwise re-streams weights per M tile with the largest tm
    that fits (tm divides the re-stream traffic) and th a multiple of 256
    (v6e/v7x MXU native), falling back to 128 multiples (v5e native)."""
    tm_cap = max(8, _round_up(M, 8))

    def fits(tm, th, bufs):
        return (_tile_vmem_bytes(tm, th, C, x_it, w_it, out_it, out_is_f32,
                                 bufs) + margin) <= usable_vmem

    # 1) Full weight residency.
    for tm in (256, 192, 128, 64, 32, 16, 8):
        tm = min(tm, tm_cap)
        if fits(tm, H, 1):
            return tm, H, True

    # 2) Hidden-chunking fallback.
    th_candidates = [t for t in range((H // 256) * 256, 0, -256) if H % t == 0]
    th_candidates += [t for t in range((H // 128) * 128, 0, -128)
                      if H % t == 0 and t not in th_candidates]
    for tm in (512, 384, 256, 128, 64, 32, 16, 8):
        tm = min(tm, tm_cap)
        for th in th_candidates:
            if fits(tm, th, 2):
                return tm, th, False

    # Last resort (unrealistically large C/H for a single tile).
    return min(128, tm_cap), (128 if H % 128 == 0 else H), False


def mlp_forward(x, w_fc_t, w_proj_t, *, compute_dtype=jnp.bfloat16,
                interpret=False):
    """MLP forward: gelu(x @ w_fc_t) @ w_proj_t.

    x:        (B, T, C)
    w_fc_t:   (C, 4C)   -- c_fc.weight.T,   ideally already stored in bf16
    w_proj_t: (4C, C)   -- c_proj.weight.T, ideally already stored in bf16
    Returns (B, T, C) in x.dtype.
    """
    B, T, C = x.shape
    C2, H = w_fc_t.shape
    assert C2 == C and w_proj_t.shape == (H, C)

    # Weights should already be stored in the compute dtype (cast once at
    # init, NOT once per forward); the cast below is only a fallback.
    wfc = w_fc_t if w_fc_t.dtype == compute_dtype else w_fc_t.astype(compute_dtype)
    wproj = (w_proj_t if w_proj_t.dtype == compute_dtype
             else w_proj_t.astype(compute_dtype))

    x_it = jnp.dtype(compute_dtype).itemsize
    w_it = jnp.dtype(compute_dtype).itemsize
    out_dtype = x.dtype
    out_it = jnp.dtype(out_dtype).itemsize
    out_is_f32 = out_dtype == jnp.float32

    M = B * T
    vmem_cap = _vmem_capacity_bytes()
    usable_vmem = max(min(vmem_cap - (10 << 20), (vmem_cap * 7) // 8), 16 << 20)

    tm, th, weights_resident = _choose_tiling(
        M, C, H, x_it, w_it, out_it, out_is_f32, usable_vmem)

    # On 64 MiB-VMEM parts (v7x: 2 TensorCores/chip) make sure the "parallel"
    # M axis has at least 2 tiles so both cores get work.
    if vmem_cap <= (64 << 20) and M > 128 and pl.cdiv(M, tm) < 2:
        tm = max(8, _round_up(pl.cdiv(M, 2), 8))

    m_tiles = pl.cdiv(M, tm)
    h_tiles = H // th
    M_pad = m_tiles * tm

    x2 = x.reshape(M, C).astype(compute_dtype)
    if M_pad != M:
        # Zero rows produce zero outputs (gelu(0) = 0); sliced off below.
        x2 = jnp.pad(x2, ((0, M_pad - M), (0, 0)))

    footprint = _tile_vmem_bytes(tm, th, C, x_it, w_it, out_it, out_is_f32,
                                 1 if weights_resident else 2)
    vmem_limit = int(min(usable_vmem, max(footprint + (6 << 20), 16 << 20)))

    weight_streams = 1 if th == H else m_tiles  # re-streamed once per M tile
    cost = pl.CostEstimate(
        flops=4 * M_pad * C * H,                             # two GEMMs
        transcendentals=M_pad * H,                           # erf
        bytes_accessed=(M_pad * C * x_it                     # x in
                        + weight_streams * 2 * C * H * w_it  # fc + proj weights
                        + M_pad * C * out_it))               # y out

    def weight_spec(shape, index_map, single_buffer):
        # Constant-index resident weights don't need a second pipeline buffer.
        if single_buffer and hasattr(pl, "Buffered"):
            try:
                return pl.BlockSpec(shape, index_map,
                                    pipeline_mode=pl.Buffered(1))
            except TypeError:
                pass
        return pl.BlockSpec(shape, index_map)

    if out_is_f32:
        kernel = _mlp_kernel_accum_out
        scratch_shapes = []
    else:
        kernel = _mlp_kernel_scratch_acc
        scratch_shapes = [pltpu.VMEM((tm, C), jnp.float32)]

    def run(single_buffer_weights):
        grid_spec = pltpu.PrefetchScalarGridSpec(
            num_scalar_prefetch=0,
            grid=(m_tiles, h_tiles),                     # reduction (H) axis last
            in_specs=[
                pl.BlockSpec((tm, C), lambda i, k: (i, 0)),                   # tokens
                weight_spec((C, th), lambda i, k: (0, k), single_buffer_weights),  # fc
                weight_spec((th, C), lambda i, k: (k, 0), single_buffer_weights),  # proj
            ],
            # Output block index independent of k -> resident across the H
            # reduction; one HBM writeback per M tile.
            out_specs=pl.BlockSpec((tm, C), lambda i, k: (i, 0)),
            scratch_shapes=scratch_shapes,
        )
        return pl.pallas_call(
            kernel,
            out_shape=jax.ShapeDtypeStruct((M_pad, C), out_dtype),
            grid_spec=grid_spec,
            compiler_params=pltpu.CompilerParams(
                dimension_semantics=("parallel", "arbitrary"),
                vmem_limit_bytes=vmem_limit),
            cost_estimate=cost,
            interpret=interpret,
        )(x2, wfc, wproj)

    single_buffer = bool(weights_resident and th == H)
    try:
        out = run(single_buffer)
    except Exception:
        if not single_buffer:
            raise
        # Fallback if pipeline_mode=pl.Buffered(1) is rejected by this
        # jax/Mosaic version: same kernel, default double-buffered weights.
        out = run(False)

    if M_pad != M:
        out = out[:M]
    return out.reshape(B, T, C)


def _reference_mlp(x, w_fc_t, w_proj_t):
    h = x @ w_fc_t
    h = 0.5 * h * (1.0 + jax.lax.erf(h / jnp.sqrt(2.0)))
    return h @ w_proj_t


if __name__ == "__main__":
    # Small config consistent with the module: n_embd=32 -> hidden=128.
    B, T, C = 2, 8, 32
    H = 4 * C

    key = jax.random.PRNGKey(0)
    kx, kfc, kproj = jax.random.split(key, 3)

    x = jax.random.normal(kx, (B, T, C), dtype=jnp.float32)

    # nn.Linear default init: U(-1/sqrt(in), 1/sqrt(in)). PyTorch stores the
    # weight as (out, in); we pass the transpose (in, out).
    bound_fc = 1.0 / math.sqrt(C)
    w_fc = jax.random.uniform(kfc, (H, C), dtype=jnp.float32,
                              minval=-bound_fc, maxval=bound_fc)
    bound_proj = 1.0 / math.sqrt(H)
    w_proj = jax.random.uniform(kproj, (C, H), dtype=jnp.float32,
                                minval=-bound_proj, maxval=bound_proj)

    # Store the MLP params in the bf16 compute dtype ONCE (outside the
    # per-step call), so the wrapper does no per-call weight conversion.
    w_fc_t = w_fc.T.astype(jnp.bfloat16)       # (C, 4C)
    w_proj_t = w_proj.T.astype(jnp.bfloat16)   # (4C, C)

    y = mlp_forward(x, w_fc_t, w_proj_t)
    y = jax.block_until_ready(y)

    # f32 reference using the same bf16-stored weights.
    y_ref = _reference_mlp(x.reshape(B * T, C),
                           w_fc_t.astype(jnp.float32),
                           w_proj_t.astype(jnp.float32)).reshape(B, T, C)
    assert y.shape == (B, T, C) and y.dtype == x.dtype
    # bf16 matmul inputs / bf16 h with f32 accumulation -> loosened tolerance.
    assert jnp.allclose(y, y_ref, atol=2e-2, rtol=2e-2), \
        float(jnp.max(jnp.abs(y - y_ref)))

    print("KERNEL_OK")
</pallas_src>

<mosaic_0001>
module attributes {stable_mosaic.version = 11 : i64} {
  func.func @_mlp_kernel_accum_out(%arg0: i32, %arg1: i32, %arg2: memref<16x32xbf16, #tpu.memory_space<vmem>>, %arg3: memref<32x128xbf16, #tpu.memory_space<vmem>>, %arg4: memref<128x32xbf16, #tpu.memory_space<vmem>>, %arg5: memref<16x32xf32, #tpu.memory_space<vmem>>) attributes {dimension_semantics = [#tpu.dimension_semantics<parallel>, #tpu.dimension_semantics<arbitrary>], iteration_bounds = array<i64: 1, 1>, scalar_prefetch = 0 : i64, scratch_operands = 0 : i64, tpu.core_type = #tpu.core_type<tc>, window_params = [{transform_indices = @transform_0, window_bounds = array<i64: 16, 32>}, {pipeline_mode = #tpu.pipeline_mode<synchronous>, transform_indices = @transform_1, window_bounds = array<i64: 32, 128>}, {pipeline_mode = #tpu.pipeline_mode<synchronous>, transform_indices = @transform_2, window_bounds = array<i64: 128, 32>}, {transform_indices = @transform_3, window_bounds = array<i64: 16, 32>}]} {
    %c0 = arith.constant 0 : index
    %c0_0 = arith.constant 0 : index
    %0 = vector.load %arg2[%c0, %c0_0] : memref<16x32xbf16, #tpu.memory_space<vmem>>, vector<16x32xbf16>
    %c0_1 = arith.constant 0 : index
    %c0_2 = arith.constant 0 : index
    %1 = vector.load %arg3[%c0_1, %c0_2] : memref<32x128xbf16, #tpu.memory_space<vmem>>, vector<32x128xbf16>
    %cst = arith.constant dense<0.000000e+00> : vector<16x128xf32>
    %2 = tpu.matmul %0, %1, %cst {dimension_numbers = #tpu.dot_dimension_numbers<[1], [0], [0], [1], [0, 0, 1, 1], [], []>} : vector<16x32xbf16>, vector<32x128xbf16>, vector<16x128xf32> -> vector<16x128xf32>
    %cst_3 = arith.constant 5.000000e-01 : f32
    %3 = vector.broadcast %cst_3 : f32 to vector<16x128xf32>
    %4 = arith.mulf %3, %2 : vector<16x128xf32>
    %cst_4 = arith.constant 0.707106769 : f32
    %5 = vector.broadcast %cst_4 : f32 to vector<16x128xf32>
    %6 = arith.mulf %2, %5 : vector<16x128xf32>
    %7 = math.erf %6 : vector<16x128xf32>
    %cst_5 = arith.constant 1.000000e+00 : f32
    %8 = vector.broadcast %cst_5 : f32 to vector<16x128xf32>
    %9 = arith.addf %8, %7 : vector<16x128xf32>
    %10 = arith.mulf %4, %9 : vector<16x128xf32>
    %11 = arith.truncf %10 : vector<16x128xf32> to vector<16x128xbf16>
    %c0_6 = arith.constant 0 : index
    %c0_7 = arith.constant 0 : index
    %12 = vector.load %arg4[%c0_6, %c0_7] : memref<128x32xbf16, #tpu.memory_space<vmem>>, vector<128x32xbf16>
    %cst_8 = arith.constant dense<0.000000e+00> : vector<16x32xf32>
    %13 = tpu.matmul %11, %12, %cst_8 {dimension_numbers = #tpu.dot_dimension_numbers<[1], [0], [0], [1], [0, 0, 1, 1], [], []>} : vector<16x128xbf16>, vector<128x32xbf16>, vector<16x32xf32> -> vector<16x32xf32>
    %c0_i32 = arith.constant 0 : i32
    %14 = arith.cmpi eq, %arg1, %c0_i32 : i32
    %15 = arith.extui %14 : i1 to i32
    %c0_i32_9 = arith.constant 0 : i32
    %16 = arith.cmpi ne, %15, %c0_i32_9 : i32
    scf.if %16 {
      %c0_12 = arith.constant 0 : index
      %c0_13 = arith.constant 0 : index
      %20 = vector.load %arg5[%c0_12, %c0_13] : memref<16x32xf32, #tpu.memory_space<vmem>>, vector<16x32xf32>
      tpu.vector_store %arg5[%c0_12, %c0_13], %13 {strides = array<i32>} : memref<16x32xf32, #tpu.memory_space<vmem>>, vector<16x32xf32>,
    } else {
    }
    %c0_i32_10 = arith.constant 0 : i32
    %17 = arith.cmpi sgt, %arg1, %c0_i32_10 : i32
    %18 = arith.extui %17 : i1 to i32
    %c0_i32_11 = arith.constant 0 : i32
    %19 = arith.cmpi ne, %18, %c0_i32_11 : i32
    scf.if %19 {
      %c0_12 = arith.constant 0 : index
      %c0_13 = arith.constant 0 : index
      %20 = vector.load %arg5[%c0_12, %c0_13] : memref<16x32xf32, #tpu.memory_space<vmem>>, vector<16x32xf32>
      %21 = arith.addf %20, %13 : vector<16x32xf32>
      %c0_14 = arith.constant 0 : index
      %c0_15 = arith.constant 0 : index
      %22 = vector.load %arg5[%c0_14, %c0_15] : memref<16x32xf32, #tpu.memory_space<vmem>>, vector<16x32xf32>
      tpu.vector_store %arg5[%c0_14, %c0_15], %21 {strides = array<i32>} : memref<16x32xf32, #tpu.memory_space<vmem>>, vector<16x32xf32>,
    } else {
    }
    return
  }
  func.func @transform_0(%arg0: i32, %arg1: i32) -> (i32, i32) {
    %c0_i32 = arith.constant 0 : i32
    %c0_i32_0 = arith.constant 0 : i32
    return %arg0, %c0_i32 : i32, i32
  }
  func.func @transform_1(%arg0: i32, %arg1: i32) -> (i32, i32) {
    %c0_i32 = arith.constant 0 : i32
    %c0_i32_0 = arith.constant 0 : i32
    return %c0_i32, %arg1 : i32, i32
  }
  func.func @transform_2(%arg0: i32, %arg1: i32) -> (i32, i32) {
    %c0_i32 = arith.constant 0 : i32
    %c0_i32_0 = arith.constant 0 : i32
    return %arg1, %c0_i32 : i32, i32
  }
  func.func @transform_3(%arg0: i32, %arg1: i32) -> (i32, i32) {
    %c0_i32 = arith.constant 0 : i32
    %c0_i32_0 = arith.constant 0 : i32
    return %arg0, %c0_i32 : i32, i32
  }
}

module attributes {stable_mosaic.version = 11 : i64} {
  func.func @_mlp_kernel_accum_out(%arg0: i32, %arg1: i32, %arg2: memref<16x32xbf16, #tpu.memory_space<vmem>>, %arg3: memref<32x128xbf16, #tpu.memory_space<vmem>>, %arg4: memref<128x32xbf16, #tpu.memory_space<vmem>>, %arg5: memref<16x32xf32, #tpu.memory_space<vmem>>) attributes {dimension_semantics = [#tpu.dimension_semantics<parallel>, #tpu.dimension_semantics<arbitrary>], iteration_bounds = array<i64: 1, 1>, scalar_prefetch = 0 : i64, scratch_operands = 0 : i64, tpu.core_type = #tpu.core_type<tc>, window_params = [{transform_indices = @transform_0, window_bounds = array<i64: 16, 32>}, {transform_indices = @transform_1, window_bounds = array<i64: 32, 128>}, {transform_indices = @transform_2, window_bounds = array<i64: 128, 32>}, {transform_indices = @transform_3, window_bounds = array<i64: 16, 32>}]} {
    %c0 = arith.constant 0 : index
    %c0_0 = arith.constant 0 : index
    %0 = vector.load %arg2[%c0, %c0_0] : memref<16x32xbf16, #tpu.memory_space<vmem>>, vector<16x32xbf16>
    %c0_1 = arith.constant 0 : index
    %c0_2 = arith.constant 0 : index
    %1 = vector.load %arg3[%c0_1, %c0_2] : memref<32x128xbf16, #tpu.memory_space<vmem>>, vector<32x128xbf16>
    %cst = arith.constant dense<0.000000e+00> : vector<16x128xf32>
    %2 = tpu.matmul %0, %1, %cst {dimension_numbers = #tpu.dot_dimension_numbers<[1], [0], [0], [1], [0, 0, 1, 1], [], []>} : vector<16x32xbf16>, vector<32x128xbf16>, vector<16x128xf32> -> vector<16x128xf32>
    %cst_3 = arith.constant 5.000000e-01 : f32
    %3 = vector.broadcast %cst_3 : f32 to vector<16x128xf32>
    %4 = arith.mulf %3, %2 : vector<16x128xf32>
    %cst_4 = arith.constant 0.707106769 : f32
    %5 = vector.broadcast %cst_4 : f32 to vector<16x128xf32>
    %6 = arith.mulf %2, %5 : vector<16x128xf32>
    %7 = math.erf %6 : vector<16x128xf32>
    %cst_5 = arith.constant 1.000000e+00 : f32
    %8 = vector.broadcast %cst_5 : f32 to vector<16x128xf32>
    %9 = arith.addf %8, %7 : vector<16x128xf32>
    %10 = arith.mulf %4, %9 : vector<16x128xf32>
    %11 = arith.truncf %10 : vector<16x128xf32> to vector<16x128xbf16>
    %c0_6 = arith.constant 0 : index
    %c0_7 = arith.constant 0 : index
    %12 = vector.load %arg4[%c0_6, %c0_7] : memref<128x32xbf16, #tpu.memory_space<vmem>>, vector<128x32xbf16>
    %cst_8 = arith.constant dense<0.000000e+00> : vector<16x32xf32>
    %13 = tpu.matmul %11, %12, %cst_8 {dimension_numbers = #tpu.dot_dimension_numbers<[1], [0], [0], [1], [0, 0, 1, 1], [], []>} : vector<16x128xbf16>, vector<128x32xbf16>, vector<16x32xf32> -> vector<16x32xf32>
    %c0_i32 = arith.constant 0 : i32
    %14 = arith.cmpi eq, %arg1, %c0_i32 : i32
    %15 = arith.extui %14 : i1 to i32
    %c0_i32_9 = arith.constant 0 : i32
    %16 = arith.cmpi ne, %15, %c0_i32_9 : i32
    scf.if %16 {
      %c0_12 = arith.constant 0 : index
      %c0_13 = arith.constant 0 : index
      %20 = vector.load %arg5[%c0_12, %c0_13] : memref<16x32xf32, #tpu.memory_space<vmem>>, vector<16x32xf32>
      tpu.vector_store %arg5[%c0_12, %c0_13], %13 {strides = array<i32>} : memref<16x32xf32, #tpu.memory_space<vmem>>, vector<16x32xf32>,
    } else {
    }
    %c0_i32_10 = arith.constant 0 : i32
    %17 = arith.cmpi sgt, %arg1, %c0_i32_10 : i32
    %18 = arith.extui %17 : i1 to i32
    %c0_i32_11 = arith.constant 0 : i32
    %19 = arith.cmpi ne, %18, %c0_i32_11 : i32
    scf.if %19 {
      %c0_12 = arith.constant 0 : index
      %c0_13 = arith.constant 0 : index
      %20 = vector.load %arg5[%c0_12, %c0_13] : memref<16x32xf32, #tpu.memory_space<vmem>>, vector<16x32xf32>
      %21 = arith.addf %20, %13 : vector<16x32xf32>
      %c0_14 = arith.constant 0 : index
      %c0_15 = arith.constant 0 : index
      %22 = vector.load %arg5[%c0_14, %c0_15] : memref<16x32xf32, #tpu.memory_space<vmem>>, vector<16x32xf32>
      tpu.vector_store %arg5[%c0_14, %c0_15], %21 {strides = array<i32>} : memref<16x32xf32, #tpu.memory_space<vmem>>, vector<16x32xf32>,
    } else {
    }
    return
  }
  func.func @transform_0(%arg0: i32, %arg1: i32) -> (i32, i32) {
    %c0_i32 = arith.constant 0 : i32
    %c0_i32_0 = arith.constant 0 : i32
    return %arg0, %c0_i32 : i32, i32
  }
  func.func @transform_1(%arg0: i32, %arg1: i32) -> (i32, i32) {
    %c0_i32 = arith.constant 0 : i32
    %c0_i32_0 = arith.constant 0 : i32
    return %c0_i32, %arg1 : i32, i32
  }
  func.func @transform_2(%arg0: i32, %arg1: i32) -> (i32, i32) {
    %c0_i32 = arith.constant 0 : i32
    %c0_i32_0 = arith.constant 0 : i32
    return %arg1, %c0_i32 : i32, i32
  }
  func.func @transform_3(%arg0: i32, %arg1: i32) -> (i32, i32) {
    %c0_i32 = arith.constant 0 : i32
    %c0_i32_0 = arith.constant 0 : i32
    return %arg0, %c0_i32 : i32, i32
  }
}

</mosaic_0001>

<llo_original>
// kernel: tpu_custom_call.1
$region0: #{tpu_custom_call.1}
  #allocation0 [shape = 'u32[]', space=smem, size = 0x4, offset = 0x4, fixed_abs, tag = 'smem constant byte address 0x4 - core index']
  #allocation1 [shape = 'u32[144,128]{1,0:T(1,128)}', space=vmem, size = 0x12000, scoped, tag = 'internal scratch']
  %s0 = inlined_call_operand.vmem [shape: bf16[16,32], index: 0, kind: input, shape index: {}]
  %s1 = inlined_call_operand.vmem [shape: bf16[32,128], index: 1, kind: input, shape index: {}]
  %s2 = inlined_call_operand.vmem [shape: bf16[128,32], index: 2, kind: input, shape index: {}]
  %s3 = inlined_call_operand.hbm [shape: f32[16,32], index: 3, kind: output, shape index: {}]
  %s4 = sld [smem:[#allocation0]]
  $region30: #{tpu_custom_call.1} parent=0
    _
  %s6 = ssub.s32 1, %s4
  %s7 = scalar_select 0, %s6, %s4
  $region1: #{tpu_custom_call.1} parent=0
    #allocation2 [shape = 'u8[8192]{0}', space=vmem, size = 0x2000, scoped, tag = 'output window, operand 0, single buffered']
    #allocation3 [shape = 's32[1]{0}', space=sflag, size = 0x4, scoped, tag = 'scoped memory for tpu_custom_call.1']
    %8 = vsyncpa [#allocation3], 0
    // Predicated region
    $region2: #{tpu_custom_call.1} parent=1 // pred_check
      _
    $region3: #{tpu_custom_call.1} parent=1 // pred_check_branch
      %10 = sbr.rel (0) target = $region5
    $region4: #{tpu_custom_call.1} parent=1 // pred_region
      _
    $region5: #{tpu_custom_call.1} parent=1 // pred_fallthru
      _
    // Predicated region
    $region6: #{tpu_custom_call.1} parent=1 // pred_check
      _
    $region7: #{tpu_custom_call.1} parent=1 // pred_check_branch
      %12 = sbr.rel (0) target = $region9
    $region8: #{tpu_custom_call.1} parent=1 // pred_region
      _
    $region9: #{tpu_custom_call.1} parent=1 // pred_fallthru
      _
    // Predicated region
    $region10: #{tpu_custom_call.1} parent=1 // pred_check
      _
    $region11: #{tpu_custom_call.1} parent=1 // pred_check_branch
      %14 = sbr.rel (0) target = $region13
    $region12: #{tpu_custom_call.1} parent=1 // pred_region
      _
    $region13: #{tpu_custom_call.1} parent=1 // pred_fallthru
      _
    %v16 = vld [vmem:[%s0] sm:$0xf]
    %v17 = vld [vmem:[%s0 + $0x4] sm:$0xf]
    %v18 = vld [vmem:[%s1] sm:$0xf]
    %v19 = vld [vmem:[%s1 + $0x4] sm:$0xf]
    %v20 = vld [vmem:[%s1 + $0x8] sm:$0xf]
    %v21 = vld [vmem:[%s1 + $0xc] sm:$0xf]
    %v24 = vunpack.c.l.b16 %v16
    %v25 = vunpack.c.l.b16 %v17
    %v26 = vpack.c.b16 %v25, %v24
    %v31 = vunpack.c.l.b16 %v18
    %v32 = vunpack.c.l.b16 %v19
    %v33 = vunpack.c.l.b16 %v20
    %v34 = vunpack.c.l.b16 %v21
    %v35 = vpack.c.b16 %v32, %v31
    %v36 = vpack.c.b16 %v34, %v33
    %vm39 = vcmask 261120
    %v41 = vsel %vm39, %v26, 0
    %43 = vmatprep.subr.bf16.mxu0 0
    %44 = vmatpush1.bf16.msra.mxu0 0
    %45 = vmatprep.subr.bf16.mxu0 0
    %46 = vmatpush1.bf16.msra.mxu0 0
    %47 = vmatprep.subr.bf16.mxu0 0
    %48 = vmatpush1.bf16.msra.mxu0 0
    %49 = vmatprep.subr.bf16.mxu0 0
    %50 = vmatpush1.bf16.msra.mxu0 0
    %51 = vmatprep.subr.bf16.mxu0 0
    %52 = vmatpush1.bf16.msra.mxu0 0
    %53 = vmatprep.subr.bf16.mxu0 0
    %54 = vmatpush1.bf16.msra.mxu0 0
    %55 = vmatprep.subr.bf16.mxu0 0
    %56 = vmatpush1.bf16.msra.mxu0 %v36
    %57 = vmatprep.subr.bf16.mxu0 0
    %58 = vmatpush1.bf16.msra.mxu0 %v35
    %59 = vmatprep.subr.bf16.mxu0 0
    %60 = vmatpush2.bf16.msra.mxu0 0
    %61 = vmatprep.subr.bf16.mxu0 0
    %62 = vmatpush2.bf16.msra.mxu0 0
    %63 = vmatprep.subr.bf16.mxu0 0
    %64 = vmatpush2.bf16.msra.mxu0 0
    %65 = vmatprep.subr.bf16.mxu0 0
    %66 = vmatpush2.bf16.msra.mxu0 0
    %67 = vmatprep.subr.bf16.mxu0 0
    %68 = vmatpush2.bf16.msra.mxu0 0
    %69 = vmatprep.subr.bf16.mxu0 0
    %70 = vmatpush2.bf16.msra.mxu0 0
    %71 = vmatprep.subr.bf16.mxu0 0
    %72 = vmatpush2.bf16.msra.mxu0 0
    %73 = vmatprep.subr.bf16.mxu0 0
    %74 = vmatpush2.bf16.msra.mxu0 0
    %75 = vmatprep.mubr.bf16.mxu0 0
    %76 = vmatmul.mubr.bf16.gmra.mxu0 %v41
    %v77 = vpop.f32.mrf.mxu0
    %v78 = vadd.f32 0.0, %v77
    %v79 = vpop.f32.mrf.mxu0
    %v80 = vpop.f32.mrf.mxu0
    %v81 = vadd.f32 0.0, %v80
    %v82 = vpop.f32.mrf.mxu0
    %83 = vdwg.mxu0
    %v84 = vmul.f32 %v78, 0.5
    %v85 = vmul.f32 %v81, 0.5
    %v86 = vmul.f32 %v78, 0.70710677
    %v87 = vmul.f32 %v81, 0.70710677
    %v88 = verf.f32.pop %v86
    %v89 = verf.f32.pop %v87
    %v90 = vadd.f32 %v88, 1.0
    %v91 = vadd.f32 %v89, 1.0
    %v92 = vmul.f32 %v84, %v90
    %v93 = vmul.f32 %v85, %v91
    %v94 = vpack.c.bf16 %v93, %v92
    %v95 = vld [vmem:[%s2] sm:$0xf]
    %v96 = vld [vmem:[%s2 + $0x4] sm:$0xf]
    %v97 = vld [vmem:[%s2 + $0x8] sm:$0xf]
    %v98 = vld [vmem:[%s2 + $0xc] sm:$0xf]
    %v99 = vld [vmem:[%s2 + $0x10] sm:$0xf]
    %v100 = vld [vmem:[%s2 + $0x14] sm:$0xf]
    %v101 = vld [vmem:[%s2 + $0x18] sm:$0xf]
    %v102 = vld [vmem:[%s2 + $0x1c] sm:$0xf]
    %v103 = vld [vmem:[%s2 + $0x20] sm:$0xf]
    %v104 = vld [vmem:[%s2 + $0x24] sm:$0xf]
    %v105 = vld [vmem:[%s2 + $0x28] sm:$0xf]
    %v106 = vld [vmem:[%s2 + $0x2c] sm:$0xf]
    %v107 = vld [vmem:[%s2 + $0x30] sm:$0xf]
    %v108 = vld [vmem:[%s2 + $0x34] sm:$0xf]
    %v109 = vld [vmem:[%s2 + $0x38] sm:$0xf]
    %v110 = vld [vmem:[%s2 + $0x3c] sm:$0xf]
    %v127 = vunpack.c.l.b16 %v95
    %v128 = vunpack.c.l.b16 %v96
    %v129 = vunpack.c.l.b16 %v97
    %v130 = vunpack.c.l.b16 %v98
    %v131 = vunpack.c.l.b16 %v99
    %v132 = vunpack.c.l.b16 %v100
    %v133 = vunpack.c.l.b16 %v101
    %v134 = vunpack.c.l.b16 %v102
    %v135 = vunpack.c.l.b16 %v103
    %v136 = vunpack.c.l.b16 %v104
    %v137 = vunpack.c.l.b16 %v105
    %v138 = vunpack.c.l.b16 %v106
    %v139 = vunpack.c.l.b16 %v107
    %v140 = vunpack.c.l.b16 %v108
    %v141 = vunpack.c.l.b16 %v109
    %v142 = vunpack.c.l.b16 %v110
    %v143 = vpack.c.b16 %v128, %v127
    %v144 = vpack.c.b16 %v130, %v129
    %v145 = vpack.c.b16 %v132, %v131
    %v146 = vpack.c.b16 %v134, %v133
    %v147 = vpack.c.b16 %v136, %v135
    %v148 = vpack.c.b16 %v138, %v137
    %v149 = vpack.c.b16 %v140, %v139
    %v150 = vpack.c.b16 %v142, %v141
    %159 = vmatprep.subr.bf16.mxu0 0
    %160 = vmatpush1.bf16.msra.mxu0 %v150
    %161 = vmatprep.subr.bf16.mxu0 0
    %162 = vmatpush1.bf16.msra.mxu0 %v149
    %163 = vmatprep.subr.bf16.mxu0 0
    %164 = vmatpush1.bf16.msra.mxu0 %v148
    %165 = vmatprep.subr.bf16.mxu0 0
    %166 = vmatpush1.bf16.msra.mxu0 %v147
    %167 = vmatprep.subr.bf16.mxu0 0
    %168 = vmatpush1.bf16.msra.mxu0 %v146
    %169 = vmatprep.subr.bf16.mxu0 0
    %170 = vmatpush1.bf16.msra.mxu0 %v145
    %171 = vmatprep.subr.bf16.mxu0 0
    %172 = vmatpush1.bf16.msra.mxu0 %v144
    %173 = vmatprep.subr.bf16.mxu0 0
    %174 = vmatpush1.bf16.msra.mxu0 %v143
    %175 = vmatprep.subr.bf16.mxu0 0
    %176 = vmatpush2.bf16.msra.mxu0 0
    %177 = vmatprep.subr.bf16.mxu0 0
    %178 = vmatpush2.bf16.msra.mxu0 0
    %179 = vmatprep.subr.bf16.mxu0 0
    %180 = vmatpush2.bf16.msra.mxu0 0
    %181 = vmatprep.subr.bf16.mxu0 0
    %182 = vmatpush2.bf16.msra.mxu0 0
    %183 = vmatprep.subr.bf16.mxu0 0
    %184 = vmatpush2.bf16.msra.mxu0 0
    %185 = vmatprep.subr.bf16.mxu0 0
    %186 = vmatpush2.bf16.msra.mxu0 0
    %187 = vmatprep.subr.bf16.mxu0 0
    %188 = vmatpush2.bf16.msra.mxu0 0
    %189 = vmatprep.subr.bf16.mxu0 0
    %190 = vmatpush2.bf16.msra.mxu0 0
    %191 = vmatprep.mubr.bf16.mxu0 0
    %192 = vmatmul.mubr.bf16.gmra.mxu0 %v94
    %v193 = vpop.f32.mrf.mxu0
    %v194 = vadd.f32 0.0, %v193
    %v195 = vpop.f32.mrf.mxu0
    %v196 = vpop.f32.mrf.mxu0
    %v197 = vadd.f32 0.0, %v196
    %v198 = vpop.f32.mrf.mxu0
    %199 = vdwg.mxu0
    %p200 = scmp.eq.s32.totalorder 0, 0
    // Predicated region
    $region14: #{tpu_custom_call.1} parent=1 // pred_check
      %p201 = pneg %p200
    $region15: #{tpu_custom_call.1} parent=1 // pred_check_branch
      %203 = sbr.rel (%p201) target = $region17
    $region16: #{tpu_custom_call.1} parent=1 // pred_region
      %204 = vst.msk [vmem:[#allocation2] sm:$0xff] %vm39, %v194
      %205 = vst.msk [vmem:[#allocation2 + $0x8] sm:$0xff] %vm39, %v197
    $region17: #{tpu_custom_call.1} parent=1 // pred_fallthru
      _
    %p206 = scmp.gt.s32.totalorder 0, 0
    // Predicated region
    $region18: #{tpu_custom_call.1} parent=1 // pred_check
      %p207 = pneg %p206
    $region19: #{tpu_custom_call.1} parent=1 // pred_check_branch
      %209 = sbr.rel (%p207) target = $region21
    $region20: #{tpu_custom_call.1} parent=1 // pred_region
      %v210 = vld [vmem:[#allocation2] sm:$0xff]
      %v211 = vld [vmem:[#allocation2 + $0x8] sm:$0xff]
      %v212 = vadd.f32 %v210, %v194
      %v213 = vadd.f32 %v211, %v197
      %214 = vst.msk [vmem:[#allocation2] sm:$0xff] %vm39, %v212
      %215 = vst.msk [vmem:[#allocation2 + $0x8] sm:$0xff] %vm39, %v213
    $region21: #{tpu_custom_call.1} parent=1 // pred_fallthru
      _
    // Predicated region
    $region22: #{tpu_custom_call.1} parent=1 // pred_check
      _
    $region23: #{tpu_custom_call.1} parent=1 // pred_check_branch
      %217 = sbr.rel (0) target = $region25
    $region24: #{tpu_custom_call.1} parent=1 // pred_region
      %s219 = ssub.s32 256, 256
      %220 = vsyncadd [#allocation3], %s219
      %s221 = sshll.u32 [#allocation2], 4
      %s222 = int_to_ptr.vmem [resolvable:$true] %s221
      %227 = dma.vmem_to_hbm [thread:$0]  %s222, 256, %s3, [#allocation3], 128, 128, 8
    $region25: #{tpu_custom_call.1} parent=1 // pred_fallthru
      _
    // Predicated region
    $region26: #{tpu_custom_call.1} parent=1 // pred_check
      _
    $region27: #{tpu_custom_call.1} parent=1 // pred_check_branch
      %229 = sbr.rel (0) target = $region29
    $region28: #{tpu_custom_call.1} parent=1 // pred_region
      %230 = dma.done [#allocation3], 256
    $region29: #{tpu_custom_call.1} parent=1 // pred_fallthru
      _
    %231 = vsyncpa [#allocation3], 1

// kernel: tpu_custom_call.1
$region0: #{tpu_custom_call.1}
  #allocation0 [shape = 'u32[]', space=smem, size = 0x4, offset = 0x4, fixed_abs, tag = 'smem constant byte address 0x4 - core index']
  #allocation1 [shape = 'u32[144,128]{1,0:T(1,128)}', space=vmem, size = 0x12000, scoped, tag = 'internal scratch']
  %s0 = inlined_call_operand.vmem [shape: bf16[16,32], index: 0, kind: input, shape index: {}]
  %s1 = inlined_call_operand.vmem [shape: bf16[32,128], index: 1, kind: input, shape index: {}]
  %s2 = inlined_call_operand.vmem [shape: bf16[128,32], index: 2, kind: input, shape index: {}]
  %s3 = inlined_call_operand.hbm [shape: f32[16,32], index: 3, kind: output, shape index: {}]
  %s4 = sld [smem:[#allocation0]]
  $region30: #{tpu_custom_call.1} parent=0
    _
  %s6 = ssub.s32 1, %s4
  %s7 = scalar_select 0, %s6, %s4
  $region1: #{tpu_custom_call.1} parent=0
    #allocation2 [shape = 'u8[8192]{0}', space=vmem, size = 0x2000, scoped, tag = 'output window, operand 0, single buffered']
    #allocation3 [shape = 's32[1]{0}', space=sflag, size = 0x4, scoped, tag = 'scoped memory for tpu_custom_call.1']
    %8 = vsyncpa [#allocation3], 0
    // Predicated region
    $region2: #{tpu_custom_call.1} parent=1 // pred_check
      _
    $region3: #{tpu_custom_call.1} parent=1 // pred_check_branch
      %10 = sbr.rel (0) target = $region5
    $region4: #{tpu_custom_call.1} parent=1 // pred_region
      _
    $region5: #{tpu_custom_call.1} parent=1 // pred_fallthru
      _
    // Predicated region
    $region6: #{tpu_custom_call.1} parent=1 // pred_check
      _
    $region7: #{tpu_custom_call.1} parent=1 // pred_check_branch
      %12 = sbr.rel (0) target = $region9
    $region8: #{tpu_custom_call.1} parent=1 // pred_region
      _
    $region9: #{tpu_custom_call.1} parent=1 // pred_fallthru
      _
    // Predicated region
    $region10: #{tpu_custom_call.1} parent=1 // pred_check
      _
    $region11: #{tpu_custom_call.1} parent=1 // pred_check_branch
      %14 = sbr.rel (0) target = $region13
    $region12: #{tpu_custom_call.1} parent=1 // pred_region
      _
    $region13: #{tpu_custom_call.1} parent=1 // pred_fallthru
      _
    %v16 = vld [vmem:[%s0] sm:$0xf]
    %v17 = vld [vmem:[%s0 + $0x4] sm:$0xf]
    %v18 = vld [vmem:[%s1] sm:$0xf]
    %v19 = vld [vmem:[%s1 + $0x4] sm:$0xf]
    %v20 = vld [vmem:[%s1 + $0x8] sm:$0xf]
    %v21 = vld [vmem:[%s1 + $0xc] sm:$0xf]
    %v24 = vunpack.c.l.b16 %v16
    %v25 = vunpack.c.l.b16 %v17
    %v26 = vpack.c.b16 %v25, %v24
    %v31 = vunpack.c.l.b16 %v18
    %v32 = vunpack.c.l.b16 %v19
    %v33 = vunpack.c.l.b16 %v20
    %v34 = vunpack.c.l.b16 %v21
    %v35 = vpack.c.b16 %v32, %v31
    %v36 = vpack.c.b16 %v34, %v33
    %vm39 = vcmask 261120
    %v41 = vsel %vm39, %v26, 0
    %43 = vmatprep.subr.bf16.mxu0 0
    %44 = vmatpush1.bf16.msra.mxu0 0
    %45 = vmatprep.subr.bf16.mxu0 0
    %46 = vmatpush1.bf16.msra.mxu0 0
    %47 = vmatprep.subr.bf16.mxu0 0
    %48 = vmatpush1.bf16.msra.mxu0 0
    %49 = vmatprep.subr.bf16.mxu0 0
    %50 = vmatpush1.bf16.msra.mxu0 0
    %51 = vmatprep.subr.bf16.mxu0 0
    %52 = vmatpush1.bf16.msra.mxu0 0
    %53 = vmatprep.subr.bf16.mxu0 0
    %54 = vmatpush1.bf16.msra.mxu0 0
    %55 = vmatprep.subr.bf16.mxu0 0
    %56 = vmatpush1.bf16.msra.mxu0 %v36
    %57 = vmatprep.subr.bf16.mxu0 0
    %58 = vmatpush1.bf16.msra.mxu0 %v35
    %59 = vmatprep.subr.bf16.mxu0 0
    %60 = vmatpush2.bf16.msra.mxu0 0
    %61 = vmatprep.subr.bf16.mxu0 0
    %62 = vmatpush2.bf16.msra.mxu0 0
    %63 = vmatprep.subr.bf16.mxu0 0
    %64 = vmatpush2.bf16.msra.mxu0 0
    %65 = vmatprep.subr.bf16.mxu0 0
    %66 = vmatpush2.bf16.msra.mxu0 0
    %67 = vmatprep.subr.bf16.mxu0 0
    %68 = vmatpush2.bf16.msra.mxu0 0
    %69 = vmatprep.subr.bf16.mxu0 0
    %70 = vmatpush2.bf16.msra.mxu0 0
    %71 = vmatprep.subr.bf16.mxu0 0
    %72 = vmatpush2.bf16.msra.mxu0 0
    %73 = vmatprep.subr.bf16.mxu0 0
    %74 = vmatpush2.bf16.msra.mxu0 0
    %75 = vmatprep.mubr.bf16.mxu0 0
    %76 = vmatmul.mubr.bf16.gmra.mxu0 %v41
    %v77 = vpop.f32.mrf.mxu0
    %v78 = vadd.f32 0.0, %v77
    %v79 = vpop.f32.mrf.mxu0
    %v80 = vpop.f32.mrf.mxu0
    %v81 = vadd.f32 0.0, %v80
    %v82 = vpop.f32.mrf.mxu0
    %83 = vdwg.mxu0
    %v84 = vmul.f32 %v78, 0.5
    %v85 = vmul.f32 %v81, 0.5
    %v86 = vmul.f32 %v78, 0.70710677
    %v87 = vmul.f32 %v81, 0.70710677
    %v88 = verf.f32.pop %v86
    %v89 = verf.f32.pop %v87
    %v90 = vadd.f32 %v88, 1.0
    %v91 = vadd.f32 %v89, 1.0
    %v92 = vmul.f32 %v84, %v90
    %v93 = vmul.f32 %v85, %v91
    %v94 = vpack.c.bf16 %v93, %v92
    %v95 = vld [vmem:[%s2] sm:$0xf]
    %v96 = vld [vmem:[%s2 + $0x4] sm:$0xf]
    %v97 = vld [vmem:[%s2 + $0x8] sm:$0xf]
    %v98 = vld [vmem:[%s2 + $0xc] sm:$0xf]
    %v99 = vld [vmem:[%s2 + $0x10] sm:$0xf]
    %v100 = vld [vmem:[%s2 + $0x14] sm:$0xf]
    %v101 = vld [vmem:[%s2 + $0x18] sm:$0xf]
    %v102 = vld [vmem:[%s2 + $0x1c] sm:$0xf]
    %v103 = vld [vmem:[%s2 + $0x20] sm:$0xf]
    %v104 = vld [vmem:[%s2 + $0x24] sm:$0xf]
    %v105 = vld [vmem:[%s2 + $0x28] sm:$0xf]
    %v106 = vld [vmem:[%s2 + $0x2c] sm:$0xf]
    %v107 = vld [vmem:[%s2 + $0x30] sm:$0xf]
    %v108 = vld [vmem:[%s2 + $0x34] sm:$0xf]
    %v109 = vld [vmem:[%s2 + $0x38] sm:$0xf]
    %v110 = vld [vmem:[%s2 + $0x3c] sm:$0xf]
    %v127 = vunpack.c.l.b16 %v95
    %v128 = vunpack.c.l.b16 %v96
    %v129 = vunpack.c.l.b16 %v97
    %v130 = vunpack.c.l.b16 %v98
    %v131 = vunpack.c.l.b16 %v99
    %v132 = vunpack.c.l.b16 %v100
    %v133 = vunpack.c.l.b16 %v101
    %v134 = vunpack.c.l.b16 %v102
    %v135 = vunpack.c.l.b16 %v103
    %v136 = vunpack.c.l.b16 %v104
    %v137 = vunpack.c.l.b16 %v105
    %v138 = vunpack.c.l.b16 %v106
    %v139 = vunpack.c.l.b16 %v107
    %v140 = vunpack.c.l.b16 %v108
    %v141 = vunpack.c.l.b16 %v109
    %v142 = vunpack.c.l.b16 %v110
    %v143 = vpack.c.b16 %v128, %v127
    %v144 = vpack.c.b16 %v130, %v129
    %v145 = vpack.c.b16 %v132, %v131
    %v146 = vpack.c.b16 %v134, %v133
    %v147 = vpack.c.b16 %v136, %v135
    %v148 = vpack.c.b16 %v138, %v137
    %v149 = vpack.c.b16 %v140, %v139
    %v150 = vpack.c.b16 %v142, %v141
    %159 = vmatprep.subr.bf16.mxu0 0
    %160 = vmatpush1.bf16.msra.mxu0 %v150
    %161 = vmatprep.subr.bf16.mxu0 0
    %162 = vmatpush1.bf16.msra.mxu0 %v149
    %163 = vmatprep.subr.bf16.mxu0 0
    %164 = vmatpush1.bf16.msra.mxu0 %v148
    %165 = vmatprep.subr.bf16.mxu0 0
    %166 = vmatpush1.bf16.msra.mxu0 %v147
    %167 = vmatprep.subr.bf16.mxu0 0
    %168 = vmatpush1.bf16.msra.mxu0 %v146
    %169 = vmatprep.subr.bf16.mxu0 0
    %170 = vmatpush1.bf16.msra.mxu0 %v145
    %171 = vmatprep.subr.bf16.mxu0 0
    %172 = vmatpush1.bf16.msra.mxu0 %v144
    %173 = vmatprep.subr.bf16.mxu0 0
    %174 = vmatpush1.bf16.msra.mxu0 %v143
    %175 = vmatprep.subr.bf16.mxu0 0
    %176 = vmatpush2.bf16.msra.mxu0 0
    %177 = vmatprep.subr.bf16.mxu0 0
    %178 = vmatpush2.bf16.msra.mxu0 0
    %179 = vmatprep.subr.bf16.mxu0 0
    %180 = vmatpush2.bf16.msra.mxu0 0
    %181 = vmatprep.subr.bf16.mxu0 0
    %182 = vmatpush2.bf16.msra.mxu0 0
    %183 = vmatprep.subr.bf16.mxu0 0
    %184 = vmatpush2.bf16.msra.mxu0 0
    %185 = vmatprep.subr.bf16.mxu0 0
    %186 = vmatpush2.bf16.msra.mxu0 0
    %187 = vmatprep.subr.bf16.mxu0 0
    %188 = vmatpush2.bf16.msra.mxu0 0
    %189 = vmatprep.subr.bf16.mxu0 0
    %190 = vmatpush2.bf16.msra.mxu0 0
    %191 = vmatprep.mubr.bf16.mxu0 0
    %192 = vmatmul.mubr.bf16.gmra.mxu0 %v94
    %v193 = vpop.f32.mrf.mxu0
    %v194 = vadd.f32 0.0, %v193
    %v195 = vpop.f32.mrf.mxu0
    %v196 = vpop.f32.mrf.mxu0
    %v197 = vadd.f32 0.0, %v196
    %v198 = vpop.f32.mrf.mxu0
    %199 = vdwg.mxu0
    %p200 = scmp.eq.s32.totalorder 0, 0
    // Predicated region
    $region14: #{tpu_custom_call.1} parent=1 // pred_check
      %p201 = pneg %p200
    $region15: #{tpu_custom_call.1} parent=1 // pred_check_branch
      %203 = sbr.rel (%p201) target = $region17
    $region16: #{tpu_custom_call.1} parent=1 // pred_region
      %204 = vst.msk [vmem:[#allocation2] sm:$0xff] %vm39, %v194
      %205 = vst.msk [vmem:[#allocation2 + $0x8] sm:$0xff] %vm39, %v197
    $region17: #{tpu_custom_call.1} parent=1 // pred_fallthru
      _
    %p206 = scmp.gt.s32.totalorder 0, 0
    // Predicated region
    $region18: #{tpu_custom_call.1} parent=1 // pred_check
      %p207 = pneg %p206
    $region19: #{tpu_custom_call.1} parent=1 // pred_check_branch
      %209 = sbr.rel (%p207) target = $region21
    $region20: #{tpu_custom_call.1} parent=1 // pred_region
      %v210 = vld [vmem:[#allocation2] sm:$0xff]
      %v211 = vld [vmem:[#allocation2 + $0x8] sm:$0xff]
      %v212 = vadd.f32 %v210, %v194
      %v213 = vadd.f32 %v211, %v197
      %214 = vst.msk [vmem:[#allocation2] sm:$0xff] %vm39, %v212
      %215 = vst.msk [vmem:[#allocation2 + $0x8] sm:$0xff] %vm39, %v213
    $region21: #{tpu_custom_call.1} parent=1 // pred_fallthru
      _
    // Predicated region
    $region22: #{tpu_custom_call.1} parent=1 // pred_check
      _
    $region23: #{tpu_custom_call.1} parent=1 // pred_check_branch
      %217 = sbr.rel (0) target = $region25
    $region24: #{tpu_custom_call.1} parent=1 // pred_region
      %s219 = ssub.s32 256, 256
      %220 = vsyncadd [#allocation3], %s219
      %s221 = sshll.u32 [#allocation2], 4
      %s222 = int_to_ptr.vmem [resolvable:$true] %s221
      %227 = dma.vmem_to_hbm [thread:$0]  %s222, 256, %s3, [#allocation3], 128, 128, 8
    $region25: #{tpu_custom_call.1} parent=1 // pred_fallthru
      _
    // Predicated region
    $region26: #{tpu_custom_call.1} parent=1 // pred_check
      _
    $region27: #{tpu_custom_call.1} parent=1 // pred_check_branch
      %229 = sbr.rel (0) target = $region29
    $region28: #{tpu_custom_call.1} parent=1 // pred_region
      %230 = dma.done [#allocation3], 256
    $region29: #{tpu_custom_call.1} parent=1 // pred_fallthru
      _
    %231 = vsyncpa [#allocation3], 1

</llo_original>
